<compile_context>
chip_gen: v7x
topology: tpu7x:2x2x1
jax: 0.10.0
libtpu: 0.0.40
codegen_flags: <defaults>
</compile_context>

<pallas_src>
import jax
import jax.numpy as jnp
from jax.experimental import pallas as pl
from jax.experimental.pallas import tpu as pltpu

HIDDEN = 100       # nn.Linear(d, 100)
HIDDEN_PAD = 128   # padded to one full lane-width


def mlp_probe_kernel(x_ref, w1_ref, b1_ref, w2_ref, b2_ref, o_ref):
    # In-kernel cast (no-op if x already bf16); MXU layer 1 with f32 accum.
    x = x_ref[...].astype(jnp.bfloat16)                       # [tb, d] bf16
    h = jnp.dot(x, w1_ref[...],
                preferred_element_type=jnp.float32)           # [tb, 128] f32
    h = jnp.maximum(h + b1_ref[...], 0.0)                     # bias + ReLU (f32)
    # Layer 2 (out_features == 1) on the MXU: w2[1,128] @ h[tb,128]^T -> [1, tb]
    # lane-dense result (padded lanes 100..127 are zero in both operands).
    o = jax.lax.dot_general(w2_ref[...], h.astype(jnp.bfloat16),
                            (((1,), (1,)), ((), ())),
                            preferred_element_type=jnp.float32)  # [1, tb] f32
    o = o + b2_ref[0]                                         # scalar bias (SMEM)
    # Sigmoid: exp + approx reciprocal, both on the EUP slot.
    o_ref[...] = pl.reciprocal(1.0 + jnp.exp(-o), approx=True).astype(o_ref.dtype)


def _round_up(x, m):
    return ((x + m - 1) // m) * m


def _vmem_capacity_bytes():
    try:
        return int(pltpu.get_tpu_info().vmem_capacity_bytes)
    except Exception:
        # Conservative fallback: assume v7x-sized (64 MiB per-TC) VMEM.
        return 64 * (1 << 20)


def mlp_probe(x, w1, b1, w2, b2, *, tile_b=None):
    """x: [B, d] (any float dtype).  Params in PyTorch nn.Linear layout:
         w1: [100, d], b1: [100], w2: [1, 100], b2: [1].
       Returns sigmoid(relu(x @ w1.T + b1) @ w2.T + b2) as [B, 1] f32."""
    B, d = x.shape
    x_itemsize = jnp.dtype(x.dtype).itemsize

    # ---- generation-aware VMEM budget: ~45% of per-core capacity ----
    cap = _vmem_capacity_bytes()
    budget = int(0.45 * cap)

    # Accurate per-x-row working-set bytes:
    per_row = (2 * d * x_itemsize              # x tile (double-buffered)
               + 2 * d                         # in-kernel bf16 copy of x
               + 2 * HIDDEN_PAD * 4            # f32 h (+ relu headroom)
               + HIDDEN_PAD * 2                # bf16 copy of h for layer-2 MXU
               + 2 * 8 * 4)                    # (1, tb) out block padded to 8
                                               #   sublanes, 2 buffers
    fixed = (2 * d * HIDDEN_PAD * 2            # W1 bf16, 2 pipeline buffers
             + 4 * 8 * HIDDEN_PAD * 4          # b1 / w2 rows (2 buffers, padded)
             + (1 << 20))                      # misc / Mosaic internal scratch

    # ---- auto-grow batch tile into the budget ----
    tb_cap = max(16, (budget - fixed) // per_row)
    # Keep a handful of grid steps for large B (v7x dual-TC sharding &
    # pipelining) while keeping tiles >= 2048 rows so step overhead is noise.
    tb = min(tb_cap, max(2048, _round_up(pl.cdiv(B, 8), 128)))
    if tile_b is not None:                     # optional user cap (tests)
        tb = min(tb, max(16, int(tile_b)))
    tb = min(tb, _round_up(B, 16))
    tb = (tb // 128) * 128 if tb >= 128 else max(16, (tb // 16) * 16)

    num_tiles = pl.cdiv(B, tb)
    grid = (num_tiles,)

    # ---- one-time layout prep: transpose to [d, H], zero-pad H 100 -> 128 ----
    w1_p = jnp.zeros((d, HIDDEN_PAD), jnp.bfloat16).at[:, :HIDDEN].set(
        w1.T.astype(jnp.bfloat16))
    b1_p = jnp.zeros((1, HIDDEN_PAD), jnp.float32).at[:, :HIDDEN].set(
        b1.astype(jnp.float32).reshape(1, HIDDEN))
    w2_p = jnp.zeros((1, HIDDEN_PAD), jnp.bfloat16).at[:, :HIDDEN].set(
        w2.astype(jnp.bfloat16).reshape(1, HIDDEN))
    b2_s = b2.astype(jnp.float32).reshape((1,))

    # VMEM limit: real need + headroom, kept below physical capacity so Mosaic
    # keeps room for its internal scratch/semaphores (matters on v7x's 64 MiB).
    needed = fixed + per_row * tb
    vmem_limit = int(min(cap - (8 << 20), max(needed + (4 << 20), 16 << 20)))

    out = pl.pallas_call(
        mlp_probe_kernel,
        out_shape=jax.ShapeDtypeStruct((num_tiles, tb), jnp.float32),
        grid=grid,
        in_specs=[
            pl.BlockSpec((tb, d), lambda i: (i, 0)),              # x: streamed
            pl.BlockSpec((d, HIDDEN_PAD), lambda i: (0, 0)),      # W1: resident
            pl.BlockSpec((1, HIDDEN_PAD), lambda i: (0, 0)),      # b1: resident
            pl.BlockSpec((1, HIDDEN_PAD), lambda i: (0, 0)),      # w2 row: resident
            pl.BlockSpec(memory_space=pltpu.MemorySpace.SMEM),    # b2: scalar
        ],
        out_specs=pl.BlockSpec((1, tb), lambda i: (i, 0)),        # lane-dense out
        compiler_params=pltpu.CompilerParams(
            dimension_semantics=("parallel",),
            vmem_limit_bytes=vmem_limit),
    )(x, w1_p, b1_p, w2_p, b2_s)

    return out.reshape(num_tiles * tb)[:B].reshape(B, 1)


def init_params(key, d):
    # Deterministic synthetic init, PyTorch nn.Linear layout.
    k1, k2, k3, k4 = jax.random.split(key, 4)
    bound1 = 1.0 / (d ** 0.5)
    bound2 = 1.0 / (HIDDEN ** 0.5)
    w1 = jax.random.uniform(k1, (HIDDEN, d), jnp.float32, -bound1, bound1)
    b1 = jax.random.uniform(k2, (HIDDEN,), jnp.float32, -bound1, bound1)
    w2 = jax.random.uniform(k3, (1, HIDDEN), jnp.float32, -bound2, bound2)
    b2 = jax.random.uniform(k4, (1,), jnp.float32, -bound2, bound2)
    return w1, b1, w2, b2


def reference(x, w1, b1, w2, b2):
    # Same bf16 MXU quantization + f32 accumulation / f32 epilogue as the kernel.
    h = jnp.dot(x.astype(jnp.bfloat16), w1.astype(jnp.bfloat16).T,
                preferred_element_type=jnp.float32)
    h = jnp.maximum(h + b1.astype(jnp.float32)[None, :], 0.0)
    logits = jnp.dot(h.astype(jnp.bfloat16), w2.astype(jnp.bfloat16).T,
                     preferred_element_type=jnp.float32)
    logits = logits + b2.astype(jnp.float32)[None, :]
    return 1.0 / (1.0 + jnp.exp(-logits))


if __name__ == "__main__":
    key = jax.random.PRNGKey(0)
    kx, kp = jax.random.split(key)

    d = 32
    w1, b1, w2, b2 = init_params(kp, d)

    # Case 1: tiny batch (single grid step, auto tile sizing).
    x_small = jax.random.normal(kx, (8, d), jnp.float32)
    out_small = jax.block_until_ready(mlp_probe(x_small, w1, b1, w2, b2))
    ref_small = reference(x_small, w1, b1, w2, b2)
    assert out_small.shape == (8, 1)
    assert jnp.allclose(out_small, ref_small, atol=3e-3, rtol=0.0), \
        float(jnp.max(jnp.abs(out_small - ref_small)))

    # Case 2: ragged batch (multi-step grid + unpadded tail-block path).
    x_rag = jax.random.normal(jax.random.PRNGKey(1), (20, d), jnp.float32)
    out_rag = jax.block_until_ready(mlp_probe(x_rag, w1, b1, w2, b2, tile_b=16))
    ref_rag = reference(x_rag, w1, b1, w2, b2)
    assert out_rag.shape == (20, 1)
    assert jnp.allclose(out_rag, ref_rag, atol=3e-3, rtol=0.0), \
        float(jnp.max(jnp.abs(out_rag - ref_rag)))

    print("KERNEL_OK")
</pallas_src>

<mosaic_0001>
module attributes {stable_mosaic.version = 11 : i64} {
  func.func @mlp_probe_kernel(%arg0: i32, %arg1: memref<16x32xf32, #tpu.memory_space<vmem>>, %arg2: memref<32x128xbf16, #tpu.memory_space<vmem>>, %arg3: memref<1x128xf32, #tpu.memory_space<vmem>>, %arg4: memref<1x128xbf16, #tpu.memory_space<vmem>>, %arg5: memref<1xf32, #tpu.memory_space<smem>>, %arg6: memref<1x16xf32, #tpu.memory_space<vmem>>) attributes {dimension_semantics = [#tpu.dimension_semantics<parallel>], iteration_bounds = array<i64: 1>, scalar_prefetch = 0 : i64, scratch_operands = 0 : i64, tpu.core_type = #tpu.core_type<tc>, window_params = [{transform_indices = @transform_0, window_bounds = array<i64: 16, 32>}, {pipeline_mode = #tpu.pipeline_mode<synchronous>, transform_indices = @transform_1, window_bounds = array<i64: 32, 128>}, {pipeline_mode = #tpu.pipeline_mode<synchronous>, transform_indices = @transform_2, window_bounds = array<i64: 1, 128>}, {pipeline_mode = #tpu.pipeline_mode<synchronous>, transform_indices = @transform_3, window_bounds = array<i64: 1, 128>}, {transform_indices = @transform_4, window_bounds = array<i64: 1>}, {transform_indices = @transform_5, window_bounds = array<i64: 1, 16>}]} {
    %c0 = arith.constant 0 : index
    %c0_0 = arith.constant 0 : index
    %0 = vector.load %arg1[%c0, %c0_0] : memref<16x32xf32, #tpu.memory_space<vmem>>, vector<16x32xf32>
    %1 = arith.truncf %0 : vector<16x32xf32> to vector<16x32xbf16>
    %c0_1 = arith.constant 0 : index
    %c0_2 = arith.constant 0 : index
    %2 = vector.load %arg2[%c0_1, %c0_2] : memref<32x128xbf16, #tpu.memory_space<vmem>>, vector<32x128xbf16>
    %cst = arith.constant dense<0.000000e+00> : vector<16x128xf32>
    %3 = tpu.matmul %1, %2, %cst {dimension_numbers = #tpu.dot_dimension_numbers<[1], [0], [0], [1], [0, 0, 1, 1], [], []>} : vector<16x32xbf16>, vector<32x128xbf16>, vector<16x128xf32> -> vector<16x128xf32>
    %c0_3 = arith.constant 0 : index
    %c0_4 = arith.constant 0 : index
    %4 = vector.load %arg3[%c0_3, %c0_4] : memref<1x128xf32, #tpu.memory_space<vmem>>, vector<1x128xf32>
    %5 = vector.broadcast %4 : vector<1x128xf32> to vector<16x128xf32>
    %6 = arith.addf %3, %5 : vector<16x128xf32>
    %cst_5 = arith.constant 0.000000e+00 : f32
    %7 = vector.broadcast %cst_5 : f32 to vector<16x128xf32>
    %8 = arith.maximumf %6, %7 : vector<16x128xf32>
    %c0_6 = arith.constant 0 : index
    %c0_7 = arith.constant 0 : index
    %9 = vector.load %arg4[%c0_6, %c0_7] : memref<1x128xbf16, #tpu.memory_space<vmem>>, vector<1x128xbf16>
    %10 = arith.truncf %8 : vector<16x128xf32> to vector<16x128xbf16>
    %cst_8 = arith.constant dense<0.000000e+00> : vector<1x16xf32>
    %11 = tpu.matmul %9, %10, %cst_8 {dimension_numbers = #tpu.dot_dimension_numbers<[1], [1], [0], [0], [0, 0, 1, 0], [], []>} : vector<1x128xbf16>, vector<16x128xbf16>, vector<1x16xf32> -> vector<1x16xf32>
    %c0_9 = arith.constant 0 : index
    %12 = memref.load %arg5[%c0_9] : memref<1xf32, #tpu.memory_space<smem>>
    %13 = vector.broadcast %12 : f32 to vector<1x16xf32>
    %14 = arith.addf %11, %13 : vector<1x16xf32>
    %cst_10 = arith.constant 0.000000e+00 : f32
    %15 = vector.broadcast %cst_10 : f32 to vector<1x16xf32>
    %16 = arith.subf %15, %14 : vector<1x16xf32>
    %17 = math.exp %16 : vector<1x16xf32>
    %cst_11 = arith.constant 1.000000e+00 : f32
    %18 = vector.broadcast %cst_11 : f32 to vector<1x16xf32>
    %19 = arith.addf %18, %17 : vector<1x16xf32>
    %20 = tpu.reciprocal %19 {approx = true} : vector<1x16xf32> -> vector<1x16xf32>
    %c0_12 = arith.constant 0 : index
    %c0_13 = arith.constant 0 : index
    %21 = vector.load %arg6[%c0_12, %c0_13] : memref<1x16xf32, #tpu.memory_space<vmem>>, vector<1x16xf32>
    tpu.vector_store %arg6[%c0_12, %c0_13], %20 {strides = array<i32>} : memref<1x16xf32, #tpu.memory_space<vmem>>, vector<1x16xf32>,
    return
  }
  func.func @transform_0(%arg0: i32) -> (i32, i32) {
    %c0_i32 = arith.constant 0 : i32
    %c0_i32_0 = arith.constant 0 : i32
    return %arg0, %c0_i32 : i32, i32
  }
  func.func @transform_1(%arg0: i32) -> (i32, i32) {
    %c0_i32 = arith.constant 0 : i32
    %c0_i32_0 = arith.constant 0 : i32
    %c0_i32_1 = arith.constant 0 : i32
    return %c0_i32, %c0_i32_0 : i32, i32
  }
  func.func @transform_2(%arg0: i32) -> (i32, i32) {
    %c0_i32 = arith.constant 0 : i32
    %c0_i32_0 = arith.constant 0 : i32
    %c0_i32_1 = arith.constant 0 : i32
    return %c0_i32, %c0_i32_0 : i32, i32
  }
  func.func @transform_3(%arg0: i32) -> (i32, i32) {
    %c0_i32 = arith.constant 0 : i32
    %c0_i32_0 = arith.constant 0 : i32
    %c0_i32_1 = arith.constant 0 : i32
    return %c0_i32, %c0_i32_0 : i32, i32
  }
  func.func @transform_4(%arg0: i32) -> i32 {
    %c0_i32 = arith.constant 0 : i32
    %c0_i32_0 = arith.constant 0 : i32
    return %c0_i32 : i32
  }
  func.func @transform_5(%arg0: i32) -> (i32, i32) {
    %c0_i32 = arith.constant 0 : i32
    %c0_i32_0 = arith.constant 0 : i32
    return %arg0, %c0_i32 : i32, i32
  }
}

</mosaic_0001>

<llo_original>
// kernel: tpu_custom_call.1
$region0: #{tpu_custom_call.1}
  #allocation0 [shape = 'u32[]', space=smem, size = 0x4, offset = 0x4, fixed_abs, tag = 'smem constant byte address 0x4 - core index']
  #allocation1 [shape = 'u32[144,128]{1,0:T(1,128)}', space=vmem, size = 0x12000, scoped, tag = 'internal scratch']
  #allocation2 [shape = 'f32[1]{0:T(128)S(6)}', space=smem, size = 0x200, scoped, tag = 'scoped memory for tpu_custom_call.1']
  %s0 = inlined_call_operand.hbm [shape: f32[8,32], index: 0, kind: input, shape index: {}]
  %s1 = inlined_call_operand.hbm [shape: bf16[32,128], index: 1, kind: input, shape index: {}]
  %s2 = inlined_call_operand.vmem [shape: f32[1,128], index: 2, kind: input, shape index: {}]
  %s3 = inlined_call_operand.vmem [shape: bf16[1,128], index: 3, kind: input, shape index: {}]
  %s4 = inlined_call_operand.<no memory space> [shape: f32[1], index: 4, kind: input, shape index: {}]
  %s5 = inlined_call_operand.hbm [shape: f32[1,16], index: 5, kind: output, shape index: {}]
  %s6 = sld [smem:[#allocation0]]
  $region38: #{tpu_custom_call.1} parent=0
    _
  %s8 = ssub.s32 1, %s6
  %s9 = scalar_select 0, %s8, %s6
  %10 = sst [smem:[#allocation2]] %s4
  $region1: #{tpu_custom_call.1} parent=0
    #allocation3 [shape = 'u8[8192]{0}', space=vmem, size = 0x2000, scoped, tag = 'input window, operand 0, single buffered']
    #allocation4 [shape = 's32[1]{0}', space=sflag, size = 0x4, scoped, tag = 'scoped memory for tpu_custom_call.1']
    #allocation5 [shape = 's32[1]{0}', space=sflag, size = 0x4, scoped, tag = 'scoped memory for tpu_custom_call.1']
    #allocation6 [shape = 'u8[8192]{0}', space=vmem, size = 0x2000, scoped, tag = 'input window, operand 1, single buffered']
    #allocation7 [shape = 's32[1]{0}', space=sflag, size = 0x4, scoped, tag = 'scoped memory for tpu_custom_call.1']
    #allocation8 [shape = 'u8[512]{0}', space=vmem, size = 0x400, scoped, tag = 'output window, operand 0, single buffered']
    %11 = vsyncpa [#allocation4], 0
    %12 = vsyncpa [#allocation7], 0
    %13 = vsyncpa [#allocation5], 0
    // Predicated region
    $region2: #{tpu_custom_call.1} parent=1 // pred_check
      _
    $region3: #{tpu_custom_call.1} parent=1 // pred_check_branch
      %15 = sbr.rel (0) target = $region5
    $region4: #{tpu_custom_call.1} parent=1 // pred_region
      %s17 = ssub.s32 256, 128
      %18 = vsyncadd [#allocation4], %s17
      %s19 = sshll.u32 [#allocation3], 4
      %s20 = int_to_ptr.vmem [resolvable:$true] %s19
      %25 = dma.hbm_to_vmem [thread:$0]  %s0, 128, %s20, [#allocation4], 128, 128, 8
    $region5: #{tpu_custom_call.1} parent=1 // pred_fallthru
      _
    // Predicated region
    $region6: #{tpu_custom_call.1} parent=1 // pred_check
      _
    $region7: #{tpu_custom_call.1} parent=1 // pred_check_branch
      %27 = sbr.rel (0) target = $region9
    $region8: #{tpu_custom_call.1} parent=1 // pred_region
      %s29 = ssub.s32 256, 256
      %30 = vsyncadd [#allocation7], %s29
      %s31 = sshll.u32 [#allocation6], 4
      %s32 = int_to_ptr.vmem [resolvable:$true] %s31
      %37 = dma.hbm_to_vmem [thread:$0]  %s1, 256, %s32, [#allocation7], 64, 64, 4
    $region9: #{tpu_custom_call.1} parent=1 // pred_fallthru
      _
    // Predicated region
    $region10: #{tpu_custom_call.1} parent=1 // pred_check
      _
    $region11: #{tpu_custom_call.1} parent=1 // pred_check_branch
      %39 = sbr.rel (0) target = $region13
    $region12: #{tpu_custom_call.1} parent=1 // pred_region
      _
    $region13: #{tpu_custom_call.1} parent=1 // pred_fallthru
      _
    // Predicated region
    $region14: #{tpu_custom_call.1} parent=1 // pred_check
      _
    $region15: #{tpu_custom_call.1} parent=1 // pred_check_branch
      %41 = sbr.rel (0) target = $region17
    $region16: #{tpu_custom_call.1} parent=1 // pred_region
      _
    $region17: #{tpu_custom_call.1} parent=1 // pred_fallthru
      _
    // Predicated region
    $region18: #{tpu_custom_call.1} parent=1 // pred_check
      _
    $region19: #{tpu_custom_call.1} parent=1 // pred_check_branch
      %43 = sbr.rel (0) target = $region21
    $region20: #{tpu_custom_call.1} parent=1 // pred_region
      _
    $region21: #{tpu_custom_call.1} parent=1 // pred_fallthru
      _
    // Predicated region
    $region22: #{tpu_custom_call.1} parent=1 // pred_check
      _
    $region23: #{tpu_custom_call.1} parent=1 // pred_check_branch
      %45 = sbr.rel (0) target = $region25
    $region24: #{tpu_custom_call.1} parent=1 // pred_region
      %46 = dma.done [#allocation4], 256
    $region25: #{tpu_custom_call.1} parent=1 // pred_fallthru
      _
    // Predicated region
    $region26: #{tpu_custom_call.1} parent=1 // pred_check
      _
    $region27: #{tpu_custom_call.1} parent=1 // pred_check_branch
      %48 = sbr.rel (0) target = $region29
    $region28: #{tpu_custom_call.1} parent=1 // pred_region
      %49 = dma.done [#allocation7], 256
    $region29: #{tpu_custom_call.1} parent=1 // pred_fallthru
      _
    %v51 = vld [vmem:[#allocation3] sm:$0xff]
    %v52 = vld [vmem:[#allocation3 + $0x8] sm:$0xff]
    %v53 = vpack.c.bf16 %v52, %v51
    %v54 = vld [vmem:[#allocation6] sm:$0xf]
    %v55 = vld [vmem:[#allocation6 + $0x4] sm:$0xf]
    %v56 = vld [vmem:[#allocation6 + $0x8] sm:$0xf]
    %v57 = vld [vmem:[#allocation6 + $0xc] sm:$0xf]
    %v58 = vld [vmem:[%s2] sm:$0x1]
    %v60 = vlaneseq
    %v61 = vshrl.u32 %v60, 7
    %v62 = vsub.s32 0, %v61
    %v63 = vrot.slane %v58, %v62
    %v69 = vunpack.c.l.b16 %v54
    %v70 = vunpack.c.l.b16 %v55
    %v71 = vunpack.c.l.b16 %v56
    %v72 = vunpack.c.l.b16 %v57
    %v73 = vpack.c.b16 %v70, %v69
    %v74 = vpack.c.b16 %v72, %v71
    %vm77 = vcmask 261120
    %v79 = vsel %vm77, %v53, 0
    %81 = vmatprep.subr.bf16.mxu0 0
    %82 = vmatpush1.bf16.msra.mxu0 %v73
    %83 = vmatprep.subr.bf16.mxu0 0
    %84 = vmatpush1.bf16.msra.mxu0 %v74
    %85 = vmatprep.subr.bf16.mxu0 0
    %86 = vmatpush1.bf16.msra.mxu0 0
    %87 = vmatprep.subr.bf16.mxu0 0
    %88 = vmatpush1.bf16.msra.mxu0 0
    %89 = vmatprep.subr.bf16.mxu0 0
    %90 = vmatpush1.bf16.msra.mxu0 0
    %91 = vmatprep.subr.bf16.mxu0 0
    %92 = vmatpush1.bf16.msra.mxu0 0
    %93 = vmatprep.subr.bf16.mxu0 0
    %94 = vmatpush1.bf16.msra.mxu0 0
    %95 = vmatprep.subr.bf16.mxu0 0
    %96 = vmatpush1.bf16.msra.mxu0 0
    %97 = vmatprep.subr.bf16.mxu0 0
    %98 = vmatpush1.bf16.msra.mxu0 0
    %99 = vmatprep.subr.bf16.mxu0 0
    %100 = vmatpush1.bf16.msra.mxu0 0
    %101 = vmatprep.subr.bf16.mxu0 0
    %102 = vmatpush1.bf16.msra.mxu0 0
    %103 = vmatprep.subr.bf16.mxu0 0
    %104 = vmatpush1.bf16.msra.mxu0 0
    %105 = vmatprep.subr.bf16.mxu0 0
    %106 = vmatpush1.bf16.msra.mxu0 0
    %107 = vmatprep.subr.bf16.mxu0 0
    %108 = vmatpush1.bf16.msra.mxu0 0
    %109 = vmatprep.subr.bf16.mxu0 0
    %110 = vmatpush1.bf16.msra.mxu0 0
    %111 = vmatprep.subr.bf16.mxu0 0
    %112 = vmatpush1.bf16.msra.mxu0 0
    %113 = vmatprep.mubr.bf16.mxu0 0
    %114 = vmatmul.mubr.bf16.gmra.mrb[0].mxu0 %v79
    %v115 = vpop.f32.mrb[0].mxu0
    %v116 = vadd.f32 %v63, %v115
    %v117 = vpop.f32.mrb[0].mxu0
    %v118 = vpop.f32.mrb[0].mxu0
    %v119 = vadd.f32 %v63, %v118
    %v120 = vpop.f32.mrb[0].mxu0
    %121 = vdwg.mxu0
    %v122 = vmax.f32 %v116, 0.0
    %v123 = vmax.f32 %v119, 0.0
    %v124 = vld [vmem:[%s3] sm:$0x1]
    %v125 = vpack.c.bf16 %v123, %v122
    %s126 = sld [smem:[#allocation2]]
    %v127 = vstv %s126
    %128 = vmatprep.subr.bf16.mxu0 0
    %129 = vmatpush1.bf16.xpose.msra.mxu0 %v125
    %130 = vmatprep.subr.bf16.mxu0 0
    %131 = vmatpush1.bf16.xpose.msra.mxu0 0
    %132 = vmatprep.subr.bf16.mxu0 0
    %133 = vmatpush1.bf16.xpose.msra.mxu0 0
    %134 = vmatprep.subr.bf16.mxu0 0
    %135 = vmatpush1.bf16.xpose.msra.mxu0 0
    %136 = vmatprep.subr.bf16.mxu0 0
    %137 = vmatpush1.bf16.xpose.msra.mxu0 0
    %138 = vmatprep.subr.bf16.mxu0 0
    %139 = vmatpush1.bf16.xpose.msra.mxu0 0
    %140 = vmatprep.subr.bf16.mxu0 0
    %141 = vmatpush1.bf16.xpose.msra.mxu0 0
    %142 = vmatprep.subr.bf16.mxu0 0
    %143 = vmatpush1.bf16.xpose.msra.mxu0 0
    %144 = vmatprep.subr.bf16.mxu0 0
    %145 = vmatpush1.bf16.xpose.msra.mxu0 0
    %146 = vmatprep.subr.bf16.mxu0 0
    %147 = vmatpush1.bf16.xpose.msra.mxu0 0
    %148 = vmatprep.subr.bf16.mxu0 0
    %149 = vmatpush1.bf16.xpose.msra.mxu0 0
    %150 = vmatprep.subr.bf16.mxu0 0
    %151 = vmatpush1.bf16.xpose.msra.mxu0 0
    %152 = vmatprep.subr.bf16.mxu0 0
    %153 = vmatpush1.bf16.xpose.msra.mxu0 0
    %154 = vmatprep.subr.bf16.mxu0 0
    %155 = vmatpush1.bf16.xpose.msra.mxu0 0
    %156 = vmatprep.subr.bf16.mxu0 0
    %157 = vmatpush1.bf16.xpose.msra.mxu0 0
    %158 = vmatprep.subr.bf16.mxu0 0
    %159 = vmatpush1.bf16.xpose.msra.mxu0 0
    %160 = vmatprep.mubr.bf16.mxu0 0
    %161 = vmatmul.mubr.bf16.gmra.mrb[0].mxu0 %v124
    %v162 = vpop.f32.mrb[0].mxu0
    %v163 = vadd.f32 %v127, %v162
    %v164 = vpop.f32.mrb[0].mxu0
    %v165 = vpop.f32.mrb[0].mxu0
    %v166 = vpop.f32.mrb[0].mxu0
    %167 = vdwg.mxu0
    %v168 = vsub.f32 0.0, %v163
    %v169 = vmul.f32 %v168, 1.442695
    %v170 = vpow.pop %v169
    %v171 = vadd.f32 %v170, 1.0
    %v172 = vrcp.pop %v171
    %vm173 = vcmask 122880
    %174 = vst.msk [vmem:[#allocation8] sm:$0x1] %vm173, %v172
    // Predicated region
    $region30: #{tpu_custom_call.1} parent=1 // pred_check
      _
    $region31: #{tpu_custom_call.1} parent=1 // pred_check_branch
      %176 = sbr.rel (0) target = $region33
    $region32: #{tpu_custom_call.1} parent=1 // pred_region
      %s178 = ssub.s32 16, 16
      %179 = vsyncadd [#allocation5], %s178
      %s181 = sshll.u32 [#allocation8], 4
      %s182 = int_to_ptr.vmem [resolvable:$true] %s181
      %184 = dma.vmem_to_hbm [thread:$0]  %s182, 16, %s5, [#allocation5]
    $region33: #{tpu_custom_call.1} parent=1 // pred_fallthru
      _
    // Predicated region
    $region34: #{tpu_custom_call.1} parent=1 // pred_check
      _
    $region35: #{tpu_custom_call.1} parent=1 // pred_check_branch
      %186 = sbr.rel (0) target = $region37
    $region36: #{tpu_custom_call.1} parent=1 // pred_region
      %187 = dma.done [#allocation5], 16
    $region37: #{tpu_custom_call.1} parent=1 // pred_fallthru
      _
    %188 = vsyncpa [#allocation4], 1
    %189 = vsyncpa [#allocation7], 1
    %190 = vsyncpa [#allocation5], 1

</llo_original>
